<compile_context>
chip_gen: v5e
topology: v5e:2x2
jax: 0.10.0
libtpu: 0.0.40
codegen_flags: <defaults>
</compile_context>

<pallas_src>
import numpy as np

import jax
import jax.numpy as jnp
from jax.experimental import pallas as pl
from jax.experimental.pallas import tpu as pltpu

_EPS = 1e-5
_TARGET_BLOCK_BYTES = 4 * 1024 * 1024   # per x-block; amortizes ~0.35 us grid-step overhead
_MAX_ROW_TILE = 4096                    # folded rows per block (multiple of 8)
_VMEM_LIMIT = 32 * 1024 * 1024          # safe on v5e/v6e (128 MiB) and v7x (64 MiB physical)


def _expand_mask(m, e_ref):
    """(rt, k) per-row mask -> per-lane mask.

    k == 1: return as-is, numpy broadcasting in the caller covers all lanes.
    k  > 1: tiny (rt, kp) @ (kp, laneW) matmul against the 0/1 expansion matrix E
            (row g -> lanes [g*F, (g+1)*F)) on the otherwise-idle MXU.
    """
    if m.shape[1] == 1:
        return m
    return jnp.dot(m, e_ref[...], preferred_element_type=jnp.float32)


def _stats_kernel(x_ref, m_ref, e_ref, stats_ref, acc_ref):
    """Accumulate masked per-lane sums into a (16, laneW) fp32 VMEM scratch.

    Rows 0:8 accumulate sum(m*x), rows 8:16 accumulate sum(m*x*x).  Per-tile
    reduction is over the *leading* axis of an (rt//8, 8, laneW) view, which
    lowers to full-vreg VPU adds (no per-tile XLU sublane reduce, no masked
    sub-sublane RMW stores).  The scratch is dumped to the output once per chunk.
    """
    i = pl.program_id(1)

    @pl.when(i == 0)
    def _():
        acc_ref[...] = jnp.zeros_like(acc_ref)

    x = x_ref[...].astype(jnp.float32)                       # (rt, laneW)
    mb = _expand_mask(m_ref[...], e_ref)                     # (rt, laneW) or (rt, 1)
    xm = x * mb
    rt, lw = x.shape
    acc_ref[0:8, :] += jnp.sum(xm.reshape(rt // 8, 8, lw), axis=0)
    acc_ref[8:16, :] += jnp.sum((xm * x).reshape(rt // 8, 8, lw), axis=0)

    @pl.when(i == pl.num_programs(1) - 1)
    def _():
        stats_ref[...] = acc_ref[...]


def _normalize_kernel(x_ref, m_ref, e_ref, scale_ref, shift_ref, o_ref):
    """out = where(mask, x * scale + shift, x) — one FMA + select per element."""
    x = x_ref[...].astype(jnp.float32)
    mb = _expand_mask(m_ref[...], e_ref)
    y = x * scale_ref[...] + shift_ref[...]
    o_ref[...] = jnp.where(mb > 0.0, y, x).astype(o_ref.dtype)


def masked_norm_batch(x, mask, weight, bias, running_mean=None, running_var=None,
                      training=True, eps=_EPS, row_tile=None, num_chunks=2):
    """Forward of MaskedNorm(norm_type='batch', num_features=F)."""
    B = x.shape[0]
    F = x.shape[-1]
    xr = x.reshape(-1, F)
    N = xr.shape[0]

    # --- lane folding: make the kernel's last dim 128-lane dense when F < 128 ---
    k = 128 // F if (F < 128 and 128 % F == 0) else 1
    lane_w = k * F

    # --- row tiling over *folded* rows (multiple of 8) ---
    if row_tile is None:
        rt_cap = (_TARGET_BLOCK_BYTES // (lane_w * 4)) // 8 * 8
        rt_cap = max(8, min(_MAX_ROW_TILE, rt_cap))
    else:
        rt_cap = max(8, (row_tile // 8) * 8)
    nf = pl.cdiv(N, k)                                 # folded rows actually needed
    per_chunk = pl.cdiv(nf, num_chunks)
    rt = min(rt_cap, ((per_chunk + 7) // 8) * 8)       # don't over-pad tiny inputs
    steps = pl.cdiv(per_chunk, rt)
    nf_pad = num_chunks * steps * rt                   # padded folded rows
    n_pad = nf_pad * k                                 # padded flat rows

    # --- pad: mask=0 rows don't touch the stats; padded outputs are sliced off ---
    xp = jnp.pad(xr, ((0, n_pad - N), (0, 0)))
    if training:
        mrows = (mask.reshape(-1) > 0).astype(jnp.float32)
    else:
        mrows = jnp.ones((N,), jnp.float32)            # eval: BatchNorm1d hits every row
    mp = jnp.pad(mrows, (0, n_pad - N))

    xf = xp.reshape(nf_pad, lane_w)
    if k > 1:
        kp = ((k + 7) // 8) * 8                        # pad fold dim -> clean MXU K
        mf = jnp.zeros((nf_pad, kp), jnp.float32).at[:, :k].set(mp.reshape(nf_pad, k))
        e = jnp.zeros((kp, lane_w), jnp.float32).at[:k, :].set(
            jnp.repeat(jnp.eye(k, dtype=jnp.float32), F, axis=1))
    else:
        mf = mp.reshape(nf_pad, 1)
        e = jnp.ones((1, lane_w), jnp.float32)         # unused by the kernels when k == 1

    cparams_stats = pltpu.CompilerParams(
        dimension_semantics=("parallel", "arbitrary"),   # leading axis -> v7x megacore
        vmem_limit_bytes=_VMEM_LIMIT)
    cparams_norm = pltpu.CompilerParams(
        dimension_semantics=("parallel",),
        vmem_limit_bytes=_VMEM_LIMIT)

    if training:
        partials = pl.pallas_call(
            _stats_kernel,
            out_shape=jax.ShapeDtypeStruct((num_chunks * 16, lane_w), jnp.float32),
            grid_spec=pltpu.PrefetchScalarGridSpec(
                num_scalar_prefetch=0,
                grid=(num_chunks, steps),
                in_specs=[
                    pl.BlockSpec((rt, lane_w), lambda c, i: (c * steps + i, 0)),
                    pl.BlockSpec((rt, mf.shape[1]), lambda c, i: (c * steps + i, 0)),
                    pl.BlockSpec((e.shape[0], lane_w), lambda c, i: (0, 0)),
                ],
                out_specs=pl.BlockSpec((16, lane_w), lambda c, i: (c, 0)),
                scratch_shapes=[pltpu.VMEM((16, lane_w), jnp.float32)],
            ),
            compiler_params=cparams_stats,
        )(xf, mf, e)

        # Tiny epilogue in plain JAX: fold chunks, sublane groups and lane groups.
        sums = partials.reshape(num_chunks, 2, 8, k, F).sum(axis=(0, 2, 3))  # (2, F)
        cnt = jnp.maximum(jnp.sum(mp), 1.0)   # guard empty selection (PyTorch would raise)
        mean = sums[0] / cnt
        # NOTE: E[x^2]-E[x]^2 in fp32 can cancel for |mean| >> std; clamp var >= 0.
        var = jnp.maximum(sums[1] / cnt - mean * mean, 0.0)  # biased var (BN training)
        # TODO(synk): running_mean/running_var momentum updates (BatchNorm1d training
        #             side effect) are not produced; forward-output parity only.
    else:
        mean = running_mean.astype(jnp.float32)
        var = running_var.astype(jnp.float32)

    scale = weight.astype(jnp.float32) * jax.lax.rsqrt(var + eps)
    shift = bias.astype(jnp.float32) - mean * scale
    scale_l = jnp.tile(scale, k).reshape(1, lane_w)
    shift_l = jnp.tile(shift, k).reshape(1, lane_w)

    out = pl.pallas_call(
        _normalize_kernel,
        out_shape=jax.ShapeDtypeStruct((nf_pad, lane_w), x.dtype),
        grid_spec=pltpu.PrefetchScalarGridSpec(
            num_scalar_prefetch=0,
            grid=(nf_pad // rt,),
            in_specs=[
                pl.BlockSpec((rt, lane_w), lambda i: (i, 0)),
                pl.BlockSpec((rt, mf.shape[1]), lambda i: (i, 0)),
                pl.BlockSpec((e.shape[0], lane_w), lambda i: (0, 0)),
                pl.BlockSpec((1, lane_w), lambda i: (0, 0)),
                pl.BlockSpec((1, lane_w), lambda i: (0, 0)),
            ],
            out_specs=pl.BlockSpec((rt, lane_w), lambda i: (i, 0)),
        ),
        compiler_params=cparams_norm,
    )(xf, mf, e, scale_l, shift_l)

    out = out.reshape(n_pad, F)[:N]
    return out.reshape(B, -1, F)


def _reference_training(x, mask, weight, bias, eps):
    """Numpy reference of the PyTorch training-mode forward."""
    F = x.shape[-1]
    xr = np.asarray(x, dtype=np.float64).reshape(-1, F)
    mr = np.asarray(mask).reshape(-1) > 0
    sel = xr[mr]
    mu = sel.mean(axis=0)
    var = sel.var(axis=0)            # biased, as BatchNorm uses in training
    normed = (sel - mu) / np.sqrt(var + eps) * np.asarray(weight) + np.asarray(bias)
    out = xr.copy()
    out[mr] = normed
    return out.reshape(x.shape[0], -1, F).astype(np.float32)


if __name__ == "__main__":
    key = jax.random.PRNGKey(0)

    def run_case(B, T, F, case_key):
        kx, km = jax.random.split(case_key)
        x = jax.random.normal(kx, (B, T, F), dtype=jnp.float32)
        mask = (jax.random.uniform(km, (B, T)) > 0.3).astype(jnp.float32)
        mask = mask.at[0, 0].set(1.0)          # guarantee at least one selected row
        weight = jnp.linspace(0.5, 1.5, F, dtype=jnp.float32)
        bias = jnp.linspace(-0.2, 0.2, F, dtype=jnp.float32)
        running_mean = jnp.zeros((F,), jnp.float32)
        running_var = jnp.ones((F,), jnp.float32)

        out = masked_norm_batch(x, mask, weight, bias, running_mean, running_var,
                                training=True)
        out = jax.block_until_ready(out)
        expected = _reference_training(x, mask, weight, bias, _EPS)
        np.testing.assert_allclose(np.asarray(out), expected, rtol=1e-4, atol=1e-4)

    k1, k2 = jax.random.split(key)
    run_case(2, 8, 32, k1)   # F < 128 and divides 128 -> lane-folded path (k=4)
    run_case(2, 5, 48, k2)   # F doesn't divide 128 -> k=1 path + row padding
    print("KERNEL_OK")
</pallas_src>

<mosaic_0001>
module attributes {stable_mosaic.version = 11 : i64} {
  func.func @_stats_kernel(%arg0: i32, %arg1: i32, %arg2: memref<8x128xf32, #tpu.memory_space<vmem>>, %arg3: memref<8x8xf32, #tpu.memory_space<vmem>>, %arg4: memref<8x128xf32, #tpu.memory_space<vmem>>, %arg5: memref<16x128xf32, #tpu.memory_space<vmem>>, %arg6: memref<16x128xf32, #tpu.memory_space<vmem>>) attributes {dimension_semantics = [#tpu.dimension_semantics<parallel>, #tpu.dimension_semantics<arbitrary>], iteration_bounds = array<i64: 2, 1>, scalar_prefetch = 0 : i64, scratch_operands = 1 : i64, tpu.core_type = #tpu.core_type<tc>, window_params = [{transform_indices = @transform_0, window_bounds = array<i64: 8, 128>}, {transform_indices = @transform_1, window_bounds = array<i64: 8, 8>}, {pipeline_mode = #tpu.pipeline_mode<synchronous>, transform_indices = @transform_2, window_bounds = array<i64: 8, 128>}, {transform_indices = @transform_3, window_bounds = array<i64: 16, 128>}]} {
    %c0_i32 = arith.constant 0 : i32
    %0 = arith.cmpi eq, %arg1, %c0_i32 : i32
    %1 = arith.extui %0 : i1 to i32
    %c0_i32_0 = arith.constant 0 : i32
    %2 = arith.cmpi ne, %1, %c0_i32_0 : i32
    scf.if %2 {
      %cst_17 = arith.constant 0.000000e+00 : f32
      %22 = vector.broadcast %cst_17 : f32 to vector<16x128xf32>
      %c0_18 = arith.constant 0 : index
      %c0_19 = arith.constant 0 : index
      %23 = vector.load %arg6[%c0_18, %c0_19] : memref<16x128xf32, #tpu.memory_space<vmem>>, vector<16x128xf32>
      tpu.vector_store %arg6[%c0_18, %c0_19], %22 {strides = array<i32>} : memref<16x128xf32, #tpu.memory_space<vmem>>, vector<16x128xf32>,
    } else {
    }
    %c0 = arith.constant 0 : index
    %c0_1 = arith.constant 0 : index
    %3 = vector.load %arg2[%c0, %c0_1] : memref<8x128xf32, #tpu.memory_space<vmem>>, vector<8x128xf32>
    %c0_2 = arith.constant 0 : index
    %c0_3 = arith.constant 0 : index
    %4 = vector.load %arg3[%c0_2, %c0_3] : memref<8x8xf32, #tpu.memory_space<vmem>>, vector<8x8xf32>
    %c0_4 = arith.constant 0 : index
    %c0_5 = arith.constant 0 : index
    %5 = vector.load %arg4[%c0_4, %c0_5] : memref<8x128xf32, #tpu.memory_space<vmem>>, vector<8x128xf32>
    %cst = arith.constant dense<0.000000e+00> : vector<8x128xf32>
    %6 = tpu.matmul %4, %5, %cst {dimension_numbers = #tpu.dot_dimension_numbers<[1], [0], [0], [1], [0, 0, 1, 1], [], []>} : vector<8x8xf32>, vector<8x128xf32>, vector<8x128xf32> -> vector<8x128xf32>
    %7 = arith.mulf %3, %6 : vector<8x128xf32>
    %c0_6 = arith.constant 0 : index
    %c0_7 = arith.constant 0 : index
    %8 = vector.load %arg6[%c0_6, %c0_7] : memref<16x128xf32, #tpu.memory_space<vmem>>, vector<8x128xf32>
    %9 = vector.shape_cast %7 : vector<8x128xf32> to vector<1x8x128xf32>
    %cst_8 = arith.constant dense<0.000000e+00> : vector<8x128xf32>
    %10 = vector.multi_reduction <add>, %9, %cst_8 [0] : vector<1x8x128xf32> to vector<8x128xf32>
    %11 = arith.addf %8, %10 : vector<8x128xf32>
    %c0_9 = arith.constant 0 : index
    %c0_10 = arith.constant 0 : index
    %12 = vector.load %arg6[%c0_9, %c0_10] : memref<16x128xf32, #tpu.memory_space<vmem>>, vector<8x128xf32>
    tpu.vector_store %arg6[%c0_9, %c0_10], %11 {strides = array<i32>} : memref<16x128xf32, #tpu.memory_space<vmem>>, vector<8x128xf32>,
    %c8 = arith.constant 8 : index
    %c0_11 = arith.constant 0 : index
    %13 = vector.load %arg6[%c8, %c0_11] : memref<16x128xf32, #tpu.memory_space<vmem>>, vector<8x128xf32>
    %14 = arith.mulf %7, %3 : vector<8x128xf32>
    %15 = vector.shape_cast %14 : vector<8x128xf32> to vector<1x8x128xf32>
    %cst_12 = arith.constant dense<0.000000e+00> : vector<8x128xf32>
    %16 = vector.multi_reduction <add>, %15, %cst_12 [0] : vector<1x8x128xf32> to vector<8x128xf32>
    %17 = arith.addf %13, %16 : vector<8x128xf32>
    %c8_13 = arith.constant 8 : index
    %c0_14 = arith.constant 0 : index
    %18 = vector.load %arg6[%c8_13, %c0_14] : memref<16x128xf32, #tpu.memory_space<vmem>>, vector<8x128xf32>
    tpu.vector_store %arg6[%c8_13, %c0_14], %17 {strides = array<i32>} : memref<16x128xf32, #tpu.memory_space<vmem>>, vector<8x128xf32>,
    %c0_i32_15 = arith.constant 0 : i32
    %19 = arith.cmpi eq, %arg1, %c0_i32_15 : i32
    %20 = arith.extui %19 : i1 to i32
    %c0_i32_16 = arith.constant 0 : i32
    %21 = arith.cmpi ne, %20, %c0_i32_16 : i32
    scf.if %21 {
      %c0_17 = arith.constant 0 : index
      %c0_18 = arith.constant 0 : index
      %22 = vector.load %arg6[%c0_17, %c0_18] : memref<16x128xf32, #tpu.memory_space<vmem>>, vector<16x128xf32>
      %c0_19 = arith.constant 0 : index
      %c0_20 = arith.constant 0 : index
      %23 = vector.load %arg5[%c0_19, %c0_20] : memref<16x128xf32, #tpu.memory_space<vmem>>, vector<16x128xf32>
      tpu.vector_store %arg5[%c0_19, %c0_20], %22 {strides = array<i32>} : memref<16x128xf32, #tpu.memory_space<vmem>>, vector<16x128xf32>,
    } else {
    }
    return
  }
  func.func @transform_0(%arg0: i32, %arg1: i32) -> (i32, i32) {
    %c1_i32 = arith.constant 1 : i32
    %0 = arith.muli %arg0, %c1_i32 : i32
    %1 = arith.addi %0, %arg1 : i32
    %c0_i32 = arith.constant 0 : i32
    %c0_i32_0 = arith.constant 0 : i32
    return %1, %c0_i32 : i32, i32
  }
  func.func @transform_1(%arg0: i32, %arg1: i32) -> (i32, i32) {
    %c1_i32 = arith.constant 1 : i32
    %0 = arith.muli %arg0, %c1_i32 : i32
    %1 = arith.addi %0, %arg1 : i32
    %c0_i32 = arith.constant 0 : i32
    %c0_i32_0 = arith.constant 0 : i32
    return %1, %c0_i32 : i32, i32
  }
  func.func @transform_2(%arg0: i32, %arg1: i32) -> (i32, i32) {
    %c0_i32 = arith.constant 0 : i32
    %c0_i32_0 = arith.constant 0 : i32
    %c0_i32_1 = arith.constant 0 : i32
    return %c0_i32, %c0_i32_0 : i32, i32
  }
  func.func @transform_3(%arg0: i32, %arg1: i32) -> (i32, i32) {
    %c0_i32 = arith.constant 0 : i32
    %c0_i32_0 = arith.constant 0 : i32
    return %arg0, %c0_i32 : i32, i32
  }
}

</mosaic_0001>

<llo_original>
// kernel: tpu_custom_call.1
$region0: #{tpu_custom_call.1}
  #allocation0 [shape = 'u32[]', space=smem, size = 0x4, offset = 0x4, fixed_abs, tag = 'smem constant byte address 0x4 - core index']
  #allocation1 [shape = 'u32[72,128]{1,0:T(1,128)}', space=vmem, size = 0x9000, scoped, tag = 'internal scratch']
  #allocation2 [shape = 'f32[16,128]{1,0:T(8,128)}', space=vmem, size = 0x2000, scoped, tag = 'scratch operand']
  %s0 = inlined_call_operand.vmem [shape: f32[16,128], index: 0, kind: input, shape index: {}]
  %s1 = inlined_call_operand.vmem [shape: f32[16,8], index: 1, kind: input, shape index: {}]
  %s2 = inlined_call_operand.vmem [shape: f32[8,128], index: 2, kind: input, shape index: {}]
  %s3 = inlined_call_operand.hbm [shape: f32[32,128], index: 3, kind: output, shape index: {}]
  %s4 = sld [smem:[#allocation0]]
  $region53: #{tpu_custom_call.1} parent=0
    _
  %s6 = ssub.s32 1, %s4
  %s7 = scalar_select 0, %s6, %s4
  $region1: #{tpu_custom_call.1} parent=0
    #allocation3 [shape = 'u8[16384]{0}', space=vmem, size = 0x4000, scoped, tag = 'output window, operand 0']
    #allocation4 [shape = 's32[2]{0}', space=sflag, size = 0x8, scoped, tag = 'scoped memory for tpu_custom_call.1']
    %8 = vsyncpa [#allocation4], 0
    %s9 = scalar_lea.sflag [#allocation4], 1
    %10 = vsyncpa %s9, 0
    loop: start=0, step=1, limit=4
    $region2: #{tpu_custom_call.1} parent=1 // loop_pre_header
      _
    $region3: #{tpu_custom_call.1} parent=1 // loop_header
      %s12 = sphi 0, %s16
      %p13 = scmp.ge.s32.totalorder %s12, 4
      %s19 = sphi 0, %s31
      %s20 = sphi 0, %s27
      %s21 = sphi 0, %s19
      %s22 = sphi 0, %s20
      %s23 = sphi 0, %s21
      %s24 = sphi 0, %s22
      %s36 = sphi 0, %s38
      %s39 = sphi 0, %s36
      %s40 = sphi 0, %s39
      %s56 = sphi 0, %s40
      %s64 = sphi 0, %s66
      %s67 = sphi 0, %s64
      %s68 = sphi 0, %s67
      %s84 = sphi 0, %s68
      %s88 = sphi 0, %s88
      %s90 = sphi 0, %s88
      %s91 = sphi 0, %s90
      %s105 = sphi 0, %s91
      %s111 = sphi 0, %s113
      %s114 = sphi 0, %s111
      %s115 = sphi 0, %s114
      %s131 = sphi 0, %s115
    $region4: #{tpu_custom_call.1} parent=1 // loop_header_branch
      %15 = sbr.rel (%p13) target = $region8
    $region5: #{tpu_custom_call.1} parent=1 // loop_body
      %s17 = ssub.s32 %s12, 1
      %s18 = ssub.s32 %s12, 2
      %s25 = sadd.s32 1, %s20
      %p26 = scmp.ge.s32.totalorder %s25, 1
      %s27 = scalar_select %p26, 0, %s25
      %s28 = sadd.s32 1, %s19
      %s29 = scalar_select %p26, %s28, %s19
      %p30 = scmp.ge.s32.totalorder %s29, 2
      %s31 = scalar_select %p30, 0, %s29
      %s32 = sadd.s32 %s19, %s20
      %s33 = sadd.s32 %s31, %s27
      %s34 = ssub.s32 %s32, %s33
      %p35 = scmp.eq.s32.totalorder %s34, 0
      %s37 = sadd.s32 %s36, 1
      %s38 = scalar_select %p35, %s36, %s37
      %p41 = pneg %p35
      %p42 = scmp.eq.s32.totalorder %s12, 1
      %p43 = por %p41, %p42
      %p44 = scmp.ne.s32.totalorder %s36, %s39
      %p45 = scmp.eq.s32.totalorder %s12, 0
      %p46 = por %p44, %p45
      %p47 = scmp.ne.s32.totalorder %s36, %s39
      %p48 = scmp.eq.s32.totalorder %s17, 1
      %p49 = por %p47, %p48
      %p50 = scmp.ne.s32.totalorder %s39, %s40
      %p51 = scmp.eq.s32.totalorder %s17, 0
      %p52 = por %p50, %p51
      %p53 = scmp.ne.s32.totalorder %s39, %s40
      %p54 = scmp.eq.s32.totalorder %s18, 1
      %p55 = por %p53, %p54
      %p57 = scmp.ne.s32.totalorder %s40, %s56
      %p58 = scmp.eq.s32.totalorder %s18, 0
      %p59 = por %p57, %p58
      %s60 = sadd.s32 %s19, %s20
      %s61 = sadd.s32 %s31, %s27
      %s62 = ssub.s32 %s60, %s61
      %p63 = scmp.eq.s32.totalorder %s62, 0
      %s65 = sadd.s32 %s64, 1
      %s66 = scalar_select %p63, %s64, %s65
      %p69 = pneg %p63
      %p70 = scmp.eq.s32.totalorder %s12, 1
      %p71 = por %p69, %p70
      %p72 = scmp.ne.s32.totalorder %s64, %s67
      %p73 = scmp.eq.s32.totalorder %s12, 0
      %p74 = por %p72, %p73
      %p75 = scmp.ne.s32.totalorder %s64, %s67
      %p76 = scmp.eq.s32.totalorder %s17, 1
      %p77 = por %p75, %p76
      %p78 = scmp.ne.s32.totalorder %s67, %s68
      %p79 = scmp.eq.s32.totalorder %s17, 0
      %p80 = por %p78, %p79
      %p81 = scmp.ne.s32.totalorder %s67, %s68
      %p82 = scmp.eq.s32.totalorder %s18, 1
      %p83 = por %p81, %p82
      %p85 = scmp.ne.s32.totalorder %s68, %s84
      %p86 = scmp.eq.s32.totalorder %s18, 0
      %p87 = por %p85, %p86
      %s89 = sadd.s32 %s88, 1
      %p92 = scmp.eq.s32.totalorder %s12, 1
      %p93 = scmp.ne.s32.totalorder %s88, %s90
      %p94 = scmp.eq.s32.totalorder %s12, 0
      %p95 = por %p93, %p94
      %p96 = scmp.ne.s32.totalorder %s88, %s90
      %p97 = scmp.eq.s32.totalorder %s17, 1
      %p98 = por %p96, %p97
      %p99 = scmp.ne.s32.totalorder %s90, %s91
      %p100 = scmp.eq.s32.totalorder %s17, 0
      %p101 = por %p99, %p100
      %p102 = scmp.ne.s32.totalorder %s90, %s91
      %p103 = scmp.eq.s32.totalorder %s18, 1
      %p104 = por %p102, %p103
      %p106 = scmp.ne.s32.totalorder %s91, %s105
      %p107 = scmp.eq.s32.totalorder %s18, 0
      %p108 = por %p106, %p107
      %s109 = ssub.s32 %s19, %s31
      %p110 = scmp.eq.s32.totalorder %s109, 0
      %s112 = sadd.s32 %s111, 1
      %s113 = scalar_select %p110, %s111, %s112
      %p116 = pneg %p110
      %p117 = scmp.eq.s32.totalorder %s12, 1
      %p118 = por %p116, %p117
      %p119 = scmp.ne.s32.totalorder %s111, %s114
      %p120 = scmp.eq.s32.totalorder %s12, 0
      %p121 = por %p119, %p120
      %p122 = scmp.ne.s32.totalorder %s111, %s114
      %p123 = scmp.eq.s32.totalorder %s17, 1
      %p124 = por %p122, %p123
      %p125 = scmp.ne.s32.totalorder %s114, %s115
      %p126 = scmp.eq.s32.totalorder %s17, 0
      %p127 = por %p125, %p126
      %p128 = scmp.ne.s32.totalorder %s114, %s115
      %p129 = scmp.eq.s32.totalorder %s18, 1
      %p130 = por %p128, %p129
      %p132 = scmp.ne.s32.totalorder %s115, %s131
      %p133 = scmp.eq.s32.totalorder %s18, 0
      %p134 = por %p132, %p133
      %p135 = scmp.le.s32.totalorder 1, %s12
      %p136 = scmp.lt.s32.totalorder %s12, 3
      %p137 = pnand %p135, %p136
      %p138 = pneg %p137
      // Predicated region
      $region9: #{tpu_custom_call.1} parent=5 // pred_check
        _
      $region10: #{tpu_custom_call.1} parent=5 // pred_check_branch
        %140 = sbr.rel (%p137) target = $region12
      $region11: #{tpu_custom_call.1} parent=5 // pred_region
        %s141 = ssub.s32 %s12, 1
        // Predicated region
        $region13: #{tpu_custom_call.1} parent=11 // pred_check
          %p142 = pneg %p101
        $region14: #{tpu_custom_call.1} parent=11 // pred_check_branch
          %144 = sbr.rel (%p142) target = $region16
        $region15: #{tpu_custom_call.1} parent=11 // pred_region
          _
        $region16: #{tpu_custom_call.1} parent=11 // pred_fallthru
          _
      $region12: #{tpu_custom_call.1} parent=5 // pred_fallthru
        _
      %p145 = scmp.lt.s32.totalorder %s12, 2
      // Predicated region
      $region17: #{tpu_custom_call.1} parent=5 // pred_check
        %p146 = pneg %p145
      $region18: #{tpu_custom_call.1} parent=5 // pred_check_branch
        %148 = sbr.rel (%p146) target = $region20
      $region19: #{tpu_custom_call.1} parent=5 // pred_region
        // Predicated region
        $region21: #{tpu_custom_call.1} parent=19 // pred_check
          %p149 = pneg %p46
        $region22: #{tpu_custom_call.1} parent=19 // pred_check_branch
          %151 = sbr.rel (%p149) target = $region24
        $region23: #{tpu_custom_call.1} parent=19 // pred_region
          %s152 = sadd.s32 %s19, %s20
          %p153 = scmp.lt.s32.totalorder %s152, 1
          %s154 = scalar_select %p153, %s152, 1
          %s155 = smul.addr %s154, 8
          %s156 = scalar_lea.vmem %s0, %s155
          %s157 = sadd.s32 %s19, %s20
        $region24: #{tpu_custom_call.1} parent=19 // pred_fallthru
          _
        // Predicated region
        $region25: #{tpu_custom_call.1} parent=19 // pred_check
          %p158 = pneg %p74
        $region26: #{tpu_custom_call.1} parent=19 // pred_check_branch
          %160 = sbr.rel (%p158) target = $region28
        $region27: #{tpu_custom_call.1} parent=19 // pred_region
          %s161 = sadd.s32 %s19, %s20
          %p162 = scmp.lt.s32.totalorder %s161, 1
          %s163 = scalar_select %p162, %s161, 1
          %s164 = smul.addr %s163, 8
          %s165 = scalar_lea.vmem %s1, %s164
          %s166 = sadd.s32 %s19, %s20
        $region28: #{tpu_custom_call.1} parent=19 // pred_fallthru
          _
      $region20: #{tpu_custom_call.1} parent=5 // pred_fallthru
        _
      %p167 = scmp.le.s32.totalorder 1, %s12
      %p168 = scmp.lt.s32.totalorder %s12, 3
      %p169 = pnand %p167, %p168
      %p170 = pneg %p169
      // Predicated region
      $region29: #{tpu_custom_call.1} parent=5 // pred_check
        _
      $region30: #{tpu_custom_call.1} parent=5 // pred_check_branch
        %172 = sbr.rel (%p169) target = $region32
      $region31: #{tpu_custom_call.1} parent=5 // pred_region
        %s173 = ssub.s32 %s12, 1
        %s174 = sadd.s32 %s21, %s22
        %p175 = scmp.lt.s32.totalorder %s174, 1
        %s176 = scalar_select %p175, %s174, 1
        %s177 = smul.addr %s176, 8
        %s178 = scalar_lea.vmem %s0, %s177
        %p179 = pneg %p52
        %p180 = pneg %p49
        %s181 = sadd.s32 %s21, %s22
        %p182 = scmp.lt.s32.totalorder %s181, 1
        %s183 = scalar_select %p182, %s181, 1
        %s184 = smul.addr %s183, 8
        %s185 = scalar_lea.vmem %s1, %s184
        %p186 = pneg %p80
        %p187 = pneg %p77
        %p188 = pneg %p101
        %p189 = pneg %p98
        %p190 = pneg %p127
        %p191 = pneg %p124
        %s192 = sand.u32 %s114, 1
        %s193 = scalar_lea.sflag [#allocation4], %s192
        %s194 = sand.u32 %s114, 1
        %s195 = smul.addr %s194, 16
        %s196 = scalar_lea.vmem [#allocation3], %s195
        %s197 = sadd.s32 %s21, %s22
        %p198 = scmp.lt.s32.totalorder %s197, 1
        %s199 = scalar_select %p198, %s197, 1
        %s200 = smul.addr %s199, 8
        %s201 = scalar_lea.vmem %s0, %s200
        %s202 = sadd.s32 %s21, %s22
        %s203 = sadd.s32 %s21, %s22
        %p204 = scmp.lt.s32.totalorder %s203, 1
        %s205 = scalar_select %p204, %s203, 1
        %s206 = smul.addr %s205, 8
        %s207 = scalar_lea.vmem %s1, %s206
        %s208 = sadd.s32 %s21, %s22
        %s209 = smul.u32 2, %s21
        %p210 = scmp.eq.s32.totalorder %s22, 0
        // Predicated region
        $region33: #{tpu_custom_call.1} parent=31 // pred_check
          %p211 = pneg %p210
        $region34: #{tpu_custom_call.1} parent=31 // pred_check_branch
          %213 = sbr.rel (%p211) target = $region36
        $region35: #{tpu_custom_call.1} parent=31 // pred_region
          %214 = vst [vmem:[#allocation2] sm:$0xff] 0.0
          %215 = vst [vmem:[#allocation2 + $0x8] sm:$0xff] 0.0
        $region36: #{tpu_custom_call.1} parent=31 // pred_fallthru
          _
        %v216 = vld [vmem:[%s201] sm:$0xff]
        %v217 = vld [vmem:[%s207] sm:$0xff]
        %v218 = vld [vmem:[%s2] sm:$0xff]
        %vm219 = vcmask 64512
        %v221 = vsel %vm219, %v217, 0
        %223 = vmatpush.msra.mxu0 0.0
        %224 = vmatpush.msra.mxu0 0.0
        %225 = vmatpush.msra.mxu0 0.0
        %226 = vmatpush.msra.mxu0 0.0
        %227 = vmatpush.msra.mxu0 0.0
        %228 = vmatpush.msra.mxu0 0.0
        %229 = vmatpush.msra.mxu0 0.0
        %230 = vmatpush.msra.mxu0 0.0
        %231 = vmatpush.msra.mxu0 0.0
        %232 = vmatpush.msra.mxu0 0.0
        %233 = vmatpush.msra.mxu0 0.0
        %234 = vmatpush.msra.mxu0 0.0
        %235 = vmatpush.msra.mxu0 0.0
        %236 = vmatpush.msra.mxu0 0.0
        %237 = vmatpush.msra.mxu0 0.0
        %238 = vmatpush.msra.mxu0 %v218
        %239 = vmatmul.f32.gmra.mxu0 %v221
        %v240 = vpop.f32.mrf.mxu0
        %v241 = vadd.f32 0.0, %v240
        %242 = vdwg.mxu0
        %v243 = vmul.f32 %v216, %v241
        %v244 = vld [vmem:[#allocation2] sm:$0xff]
        %v245 = vadd.f32 %v243, 0.0
        %v246 = vadd.f32 %v244, %v245
        %247 = vst [vmem:[#allocation2] sm:$0xff] %v246
        %v248 = vld [vmem:[#allocation2 + $0x8] sm:$0xff]
        %v249 = vmul.f32 %v243, %v216
        %v250 = vadd.f32 %v249, 0.0
        %v251 = vadd.f32 %v248, %v250
        %252 = vst [vmem:[#allocation2 + $0x8] sm:$0xff] %v251
        // Predicated region
        $region37: #{tpu_custom_call.1} parent=31 // pred_check
          %p253 = pneg %p210
        $region38: #{tpu_custom_call.1} parent=31 // pred_check_branch
          %255 = sbr.rel (%p253) target = $region40
        $region39: #{tpu_custom_call.1} parent=31 // pred_region
          %v256 = vld [vmem:[#allocation2] sm:$0xff]
          %v257 = vld [vmem:[#allocation2 + $0x8] sm:$0xff]
          %258 = vst [vmem:[%s196] sm:$0xff] %v256
          %259 = vst [vmem:[%s196 + $0x8] sm:$0xff] %v257
        $region40: #{tpu_custom_call.1} parent=31 // pred_fallthru
          _
        %s260 = sand.u32 %s114, 1
        %s261 = scalar_lea.sflag [#allocation4], %s260
        %s262 = sand.u32 %s114, 1
        %s263 = smul.addr %s262, 16
        %s264 = scalar_lea.vmem [#allocation3], %s263
        // Predicated region
        $region41: #{tpu_custom_call.1} parent=31 // pred_check
          %p265 = pneg %p124
        $region42: #{tpu_custom_call.1} parent=31 // pred_check_branch
          %267 = sbr.rel (%p265) target = $region44
        $region43: #{tpu_custom_call.1} parent=31 // pred_region
          %s268 = smul.u32 2, %s21
          %270 = vsyncadd %s261, 0
          %s271 = smul.addr %s268, 8
          %s272 = scalar_lea.hbm %s3, %s271
          %s273 = sshll.u32 %s264, 4
          %s274 = int_to_ptr.vmem [resolvable:$true] %s273
          %s275 = sshll.u32 %s272, 4
          %s276 = int_to_ptr.hbm [resolvable:$true] %s275
          %281 = dma.vmem_to_hbm [thread:$0]  %s274, 256, %s276, %s261, 128, 128, 8
        $region44: #{tpu_custom_call.1} parent=31 // pred_fallthru
          _
      $region32: #{tpu_custom_call.1} parent=5 // pred_fallthru
        _
      %p282 = scmp.le.s32.totalorder 2, %s12
      // Predicated region
      $region45: #{tpu_custom_call.1} parent=5 // pred_check
        %p283 = pneg %p282
      $region46: #{tpu_custom_call.1} parent=5 // pred_check_branch
        %285 = sbr.rel (%p283) target = $region48
      $region47: #{tpu_custom_call.1} parent=5 // pred_region
        %s286 = ssub.s32 %s12, 2
        // Predicated region
        $region49: #{tpu_custom_call.1} parent=47 // pred_check
          %p287 = pneg %p130
        $region50: #{tpu_custom_call.1} parent=47 // pred_check_branch
          %289 = sbr.rel (%p287) target = $region52
        $region51: #{tpu_custom_call.1} parent=47 // pred_region
          %s290 = sand.u32 %s115, 1
          %s291 = scalar_lea.sflag [#allocation4], %s290
          %s292 = sand.u32 %s115, 1
          %s293 = smul.addr %s292, 16
          %s294 = scalar_lea.vmem [#allocation3], %s293
          %296 = dma.done %s291, 256
        $region52: #{tpu_custom_call.1} parent=47 // pred_fallthru
          _
      $region48: #{tpu_custom_call.1} parent=5 // pred_fallthru
        _
    $region6: #{tpu_custom_call.1} parent=1 // loop_footer
      %s16 = sadd.s32 1, %s12
    $region7: #{tpu_custom_call.1} parent=1 // loop_footer_branch
      %11 = sbr.rel target = $region3
    $region8: #{tpu_custom_call.1} parent=1 // loop_exit
      _
    %297 = vsyncpa [#allocation4], 1
    %s298 = scalar_lea.sflag [#allocation4], 1
    %299 = vsyncpa %s298, 1

</llo_original>
